<compile_context>
chip_gen: v5e
topology: v5e:2x2
jax: 0.10.0
libtpu: 0.0.40
codegen_flags: <defaults>
</compile_context>

<pallas_src>
import functools

import jax
import jax.numpy as jnp
from jax.experimental import pallas as pl
from jax.experimental.pallas import tpu as pltpu


def squeeze_block_kernel(x_ref, w1_ref, b1_ref, w2_ref, b2_ref, o_ref, *, inv_hw):
    # x_ref: (Bt, HW, C) tile; C is the lane axis.
    x = x_ref[...]                                                  # input dtype

    # Global average pool over spatial axis with f32 accumulation (no full-tile upcast).
    pooled = jnp.sum(x, axis=1, dtype=jnp.float32) * inv_hw         # (Bt, C) f32

    # Dense 1: Linear(C -> C//divide) + ReLU
    h = jnp.dot(pooled, w1_ref[...],
                preferred_element_type=jnp.float32) + b1_ref[...]   # (Bt, hidden)
    h = jnp.maximum(h, 0.0)

    # Dense 2: Linear(C//divide -> C) + h_sigmoid (relu6(x+3)/6)
    g = jnp.dot(h, w2_ref[...],
                preferred_element_type=jnp.float32) + b2_ref[...]   # (Bt, C)
    g = jnp.clip(g + 3.0, 0.0, 6.0) * (1.0 / 6.0)

    # Per-channel gating in the I/O dtype; gate broadcasts over the sublane (HW) axis.
    o_ref[...] = x * g.astype(o_ref.dtype)[:, None, :]


def squeeze_block(x, w1, b1, w2, b2, *, block_bytes_budget=6 * 1024 * 1024):
    """x: (B, C, H, W). Weights stored as (in, out); biases as (1, out), float32."""
    B, C, H, W = x.shape
    HW = H * W
    hidden = w1.shape[1]
    itemsize = jnp.dtype(x.dtype).itemsize

    # Lane-dense layout: channels on the lane axis.
    x3 = jnp.transpose(x, (0, 2, 3, 1)).reshape(B, HW, C)

    # Pick batch tile Bt from a VMEM budget; keep >= 2 grid steps when B allows (v7x).
    per_batch_bytes = HW * C * itemsize
    bt = max(1, block_bytes_budget // per_batch_bytes)
    if B >= 2:
        bt = min(bt, pl.cdiv(B, 2))
    bt = int(min(bt, B))

    # Pad batch so Bt divides it (zero rows produce zero outputs; sliced off below).
    n_steps = pl.cdiv(B, bt)
    Bp = n_steps * bt
    if Bp != B:
        x3 = jnp.pad(x3, ((0, Bp - B), (0, 0), (0, 0)))

    block_bytes = bt * per_batch_bytes
    weight_bytes = (C * hidden + hidden * C + hidden + C) * 4
    # x block + out block, each double-buffered, plus weights and slack.
    vmem_limit = int(min(64 * 1024 * 1024,
                         max(16 * 1024 * 1024,
                             4 * block_bytes + 4 * weight_bytes + (4 << 20))))

    kernel = functools.partial(squeeze_block_kernel, inv_hw=1.0 / HW)

    out3 = pl.pallas_call(
        kernel,
        out_shape=jax.ShapeDtypeStruct((Bp, HW, C), x.dtype),
        grid_spec=pltpu.PrefetchScalarGridSpec(
            num_scalar_prefetch=0,
            grid=(n_steps,),
            in_specs=[
                pl.BlockSpec((bt, HW, C), lambda b: (b, 0, 0)),      # x tile (Bt batches)
                pl.BlockSpec((C, hidden), lambda b: (0, 0)),         # W1 (resident)
                pl.BlockSpec((1, hidden), lambda b: (0, 0)),         # b1
                pl.BlockSpec((hidden, C), lambda b: (0, 0)),         # W2
                pl.BlockSpec((1, C), lambda b: (0, 0)),              # b2
            ],
            out_specs=pl.BlockSpec((bt, HW, C), lambda b: (b, 0, 0)),
        ),
        compiler_params=pltpu.CompilerParams(
            dimension_semantics=("parallel",),
            vmem_limit_bytes=vmem_limit,
        ),
        cost_estimate=pl.CostEstimate(
            flops=int(4 * Bp * C * hidden + 2 * Bp * HW * C),
            transcendentals=0,
            bytes_accessed=int(2 * Bp * HW * C * itemsize + weight_bytes),
        ),
    )(x3, w1, b1, w2, b2)

    out3 = out3[:B]
    return jnp.transpose(out3.reshape(B, H, W, C), (0, 3, 1, 2))


def reference(x, w1, b1, w2, b2):
    xf = x.astype(jnp.float32)
    pooled = jnp.mean(xf, axis=(2, 3))
    h = jnp.maximum(pooled @ w1 + b1, 0.0)
    g = jnp.clip(h @ w2 + b2 + 3.0, 0.0, 6.0) / 6.0
    return xf * g[:, :, None, None]


if __name__ == "__main__":
    # Small shapes consistent with the module: exp_size (=channels) divisible by 4.
    B, C, H, W = 4, 32, 8, 8
    divide = 4
    hidden = C // divide

    key = jax.random.PRNGKey(0)
    kx, k1, k2, k3, k4 = jax.random.split(key, 5)

    x = jax.random.normal(kx, (B, C, H, W), dtype=jnp.float32)
    # "Linear" params stored as (in_features, out_features) so y = x @ W + b
    # (equivalent to PyTorch's x @ weight.T + bias).
    w1 = jax.random.normal(k1, (C, hidden), dtype=jnp.float32) * 0.1
    b1 = jax.random.normal(k2, (1, hidden), dtype=jnp.float32) * 0.1
    w2 = jax.random.normal(k3, (hidden, C), dtype=jnp.float32) * 0.1
    b2 = jax.random.normal(k4, (1, C), dtype=jnp.float32) * 0.1

    ref = reference(x, w1, b1, w2, b2)

    # float32 I/O
    out = squeeze_block(x, w1, b1, w2, b2)
    jax.block_until_ready(out)
    assert out.shape == (B, C, H, W)
    assert jnp.allclose(out, ref, atol=1e-5, rtol=1e-5), "f32 mismatch vs reference"

    # bf16 I/O (halves HBM traffic; accumulation stays f32 inside the kernel)
    out_bf16 = squeeze_block(x.astype(jnp.bfloat16), w1, b1, w2, b2)
    jax.block_until_ready(out_bf16)
    assert out_bf16.dtype == jnp.bfloat16
    assert jnp.allclose(out_bf16.astype(jnp.float32), ref, atol=5e-2, rtol=5e-2), \
        "bf16 mismatch vs reference"

    print("KERNEL_OK")
</pallas_src>

<mosaic_0001>
module attributes {stable_mosaic.version = 11 : i64} {
  func.func @squeeze_block_kernel(%arg0: i32, %arg1: memref<2x64x32xf32, #tpu.memory_space<vmem>>, %arg2: memref<32x8xf32, #tpu.memory_space<vmem>>, %arg3: memref<1x8xf32, #tpu.memory_space<vmem>>, %arg4: memref<8x32xf32, #tpu.memory_space<vmem>>, %arg5: memref<1x32xf32, #tpu.memory_space<vmem>>, %arg6: memref<2x64x32xf32, #tpu.memory_space<vmem>>) attributes {dimension_semantics = [#tpu.dimension_semantics<parallel>], iteration_bounds = array<i64: 2>, scalar_prefetch = 0 : i64, scratch_operands = 0 : i64, tpu.core_type = #tpu.core_type<tc>, window_params = [{transform_indices = @transform_0, window_bounds = array<i64: 2, 64, 32>}, {pipeline_mode = #tpu.pipeline_mode<synchronous>, transform_indices = @transform_1, window_bounds = array<i64: 32, 8>}, {pipeline_mode = #tpu.pipeline_mode<synchronous>, transform_indices = @transform_2, window_bounds = array<i64: 1, 8>}, {pipeline_mode = #tpu.pipeline_mode<synchronous>, transform_indices = @transform_3, window_bounds = array<i64: 8, 32>}, {pipeline_mode = #tpu.pipeline_mode<synchronous>, transform_indices = @transform_4, window_bounds = array<i64: 1, 32>}, {transform_indices = @transform_5, window_bounds = array<i64: 2, 64, 32>}]} {
    %c0 = arith.constant 0 : index
    %c0_0 = arith.constant 0 : index
    %c0_1 = arith.constant 0 : index
    %0 = vector.load %arg1[%c0, %c0_0, %c0_1] : memref<2x64x32xf32, #tpu.memory_space<vmem>>, vector<2x64x32xf32>
    %cst = arith.constant dense<0.000000e+00> : vector<2x32xf32>
    %1 = vector.multi_reduction <add>, %0, %cst [1] : vector<2x64x32xf32> to vector<2x32xf32>
    %cst_2 = arith.constant 1.562500e-02 : f32
    %2 = vector.broadcast %cst_2 : f32 to vector<2x32xf32>
    %3 = arith.mulf %1, %2 : vector<2x32xf32>
    %c0_3 = arith.constant 0 : index
    %c0_4 = arith.constant 0 : index
    %4 = vector.load %arg2[%c0_3, %c0_4] : memref<32x8xf32, #tpu.memory_space<vmem>>, vector<32x8xf32>
    %cst_5 = arith.constant dense<0.000000e+00> : vector<2x8xf32>
    %5 = tpu.matmul %3, %4, %cst_5 {dimension_numbers = #tpu.dot_dimension_numbers<[1], [0], [0], [1], [0, 0, 1, 1], [], []>} : vector<2x32xf32>, vector<32x8xf32>, vector<2x8xf32> -> vector<2x8xf32>
    %c0_6 = arith.constant 0 : index
    %c0_7 = arith.constant 0 : index
    %6 = vector.load %arg3[%c0_6, %c0_7] : memref<1x8xf32, #tpu.memory_space<vmem>>, vector<1x8xf32>
    %7 = vector.broadcast %6 : vector<1x8xf32> to vector<2x8xf32>
    %8 = arith.addf %5, %7 : vector<2x8xf32>
    %cst_8 = arith.constant 0.000000e+00 : f32
    %9 = vector.broadcast %cst_8 : f32 to vector<2x8xf32>
    %10 = arith.maximumf %8, %9 : vector<2x8xf32>
    %c0_9 = arith.constant 0 : index
    %c0_10 = arith.constant 0 : index
    %11 = vector.load %arg4[%c0_9, %c0_10] : memref<8x32xf32, #tpu.memory_space<vmem>>, vector<8x32xf32>
    %cst_11 = arith.constant dense<0.000000e+00> : vector<2x32xf32>
    %12 = tpu.matmul %10, %11, %cst_11 {dimension_numbers = #tpu.dot_dimension_numbers<[1], [0], [0], [1], [0, 0, 1, 1], [], []>} : vector<2x8xf32>, vector<8x32xf32>, vector<2x32xf32> -> vector<2x32xf32>
    %c0_12 = arith.constant 0 : index
    %c0_13 = arith.constant 0 : index
    %13 = vector.load %arg5[%c0_12, %c0_13] : memref<1x32xf32, #tpu.memory_space<vmem>>, vector<1x32xf32>
    %14 = vector.broadcast %13 : vector<1x32xf32> to vector<2x32xf32>
    %15 = arith.addf %12, %14 : vector<2x32xf32>
    %cst_14 = arith.constant 3.000000e+00 : f32
    %16 = vector.broadcast %cst_14 : f32 to vector<2x32xf32>
    %17 = arith.addf %15, %16 : vector<2x32xf32>
    %cst_15 = arith.constant 0.000000e+00 : f32
    %cst_16 = arith.constant 6.000000e+00 : f32
    %18 = vector.broadcast %cst_15 : f32 to vector<2x32xf32>
    %19 = arith.maximumf %18, %17 : vector<2x32xf32>
    %20 = vector.broadcast %cst_16 : f32 to vector<2x32xf32>
    %21 = arith.minimumf %20, %19 : vector<2x32xf32>
    %cst_17 = arith.constant 0.166666672 : f32
    %22 = vector.broadcast %cst_17 : f32 to vector<2x32xf32>
    %23 = arith.mulf %21, %22 : vector<2x32xf32>
    %24 = vector.shape_cast %23 : vector<2x32xf32> to vector<2x1x32xf32>
    %25 = vector.broadcast %24 : vector<2x1x32xf32> to vector<2x64x32xf32>
    %26 = arith.mulf %0, %25 : vector<2x64x32xf32>
    %c0_18 = arith.constant 0 : index
    %c0_19 = arith.constant 0 : index
    %c0_20 = arith.constant 0 : index
    %27 = vector.load %arg6[%c0_18, %c0_19, %c0_20] : memref<2x64x32xf32, #tpu.memory_space<vmem>>, vector<2x64x32xf32>
    tpu.vector_store %arg6[%c0_18, %c0_19, %c0_20], %26 {strides = array<i32>} : memref<2x64x32xf32, #tpu.memory_space<vmem>>, vector<2x64x32xf32>,
    return
  }
  func.func @transform_0(%arg0: i32) -> (i32, i32, i32) {
    %c0_i32 = arith.constant 0 : i32
    %c0_i32_0 = arith.constant 0 : i32
    %c0_i32_1 = arith.constant 0 : i32
    return %arg0, %c0_i32, %c0_i32_0 : i32, i32, i32
  }
  func.func @transform_1(%arg0: i32) -> (i32, i32) {
    %c0_i32 = arith.constant 0 : i32
    %c0_i32_0 = arith.constant 0 : i32
    %c0_i32_1 = arith.constant 0 : i32
    return %c0_i32, %c0_i32_0 : i32, i32
  }
  func.func @transform_2(%arg0: i32) -> (i32, i32) {
    %c0_i32 = arith.constant 0 : i32
    %c0_i32_0 = arith.constant 0 : i32
    %c0_i32_1 = arith.constant 0 : i32
    return %c0_i32, %c0_i32_0 : i32, i32
  }
  func.func @transform_3(%arg0: i32) -> (i32, i32) {
    %c0_i32 = arith.constant 0 : i32
    %c0_i32_0 = arith.constant 0 : i32
    %c0_i32_1 = arith.constant 0 : i32
    return %c0_i32, %c0_i32_0 : i32, i32
  }
  func.func @transform_4(%arg0: i32) -> (i32, i32) {
    %c0_i32 = arith.constant 0 : i32
    %c0_i32_0 = arith.constant 0 : i32
    %c0_i32_1 = arith.constant 0 : i32
    return %c0_i32, %c0_i32_0 : i32, i32
  }
  func.func @transform_5(%arg0: i32) -> (i32, i32, i32) {
    %c0_i32 = arith.constant 0 : i32
    %c0_i32_0 = arith.constant 0 : i32
    %c0_i32_1 = arith.constant 0 : i32
    return %arg0, %c0_i32, %c0_i32_0 : i32, i32, i32
  }
}

</mosaic_0001>

<llo_original>
// kernel: tpu_custom_call.1
$region0: #{tpu_custom_call.1}
  #allocation0 [shape = 'u32[]', space=smem, size = 0x4, offset = 0x4, fixed_abs, tag = 'smem constant byte address 0x4 - core index']
  #allocation1 [shape = 'u32[72,128]{1,0:T(1,128)}', space=vmem, size = 0x9000, scoped, tag = 'internal scratch']
  %s0 = inlined_call_operand.vmem [shape: f32[4,64,32], index: 0, kind: input, shape index: {}]
  %s1 = inlined_call_operand.vmem [shape: f32[32,8], index: 1, kind: input, shape index: {}]
  %s2 = inlined_call_operand.vmem [shape: f32[1,8], index: 2, kind: input, shape index: {}]
  %s3 = inlined_call_operand.vmem [shape: f32[8,32], index: 3, kind: input, shape index: {}]
  %s4 = inlined_call_operand.vmem [shape: f32[1,32], index: 4, kind: input, shape index: {}]
  %s5 = inlined_call_operand.vmem [shape: f32[4,64,32], index: 5, kind: output, shape index: {}]
  %s6 = sld [smem:[#allocation0]]
  $region53: #{tpu_custom_call.1} parent=0
    _
  %s8 = ssub.s32 1, %s6
  %s9 = scalar_select 0, %s8, %s6
  loop: start=0, step=1, limit=4
  $region2: #{tpu_custom_call.1} parent=0 // loop_pre_header
    _
  $region3: #{tpu_custom_call.1} parent=0 // loop_header
    %s11 = sphi 0, %s15
    %p12 = scmp.ge.s32.totalorder %s11, 4
    %s21 = sphi 0, %s23
    %s24 = sphi 0, %s21
    %s25 = sphi 0, %s24
    %s41 = sphi 0, %s25
    %s45 = sphi 0, %s45
    %s47 = sphi 0, %s45
    %s48 = sphi 0, %s47
    %s62 = sphi 0, %s48
    %s66 = sphi 0, %s66
    %s68 = sphi 0, %s66
    %s69 = sphi 0, %s68
    %s83 = sphi 0, %s69
    %s87 = sphi 0, %s87
    %s89 = sphi 0, %s87
    %s90 = sphi 0, %s89
    %s104 = sphi 0, %s90
    %s108 = sphi 0, %s108
    %s110 = sphi 0, %s108
    %s111 = sphi 0, %s110
    %s125 = sphi 0, %s111
    %s131 = sphi 0, %s133
    %s134 = sphi 0, %s131
    %s135 = sphi 0, %s134
    %s151 = sphi 0, %s135
  $region4: #{tpu_custom_call.1} parent=0 // loop_header_branch
    %14 = sbr.rel (%p12) target = $region8
  $region5: #{tpu_custom_call.1} parent=0 // loop_body
    %s16 = ssub.s32 %s11, 1
    %s17 = ssub.s32 %s11, 2
    %s18 = sadd.s32 %s11, 1
    %s19 = ssub.s32 %s11, %s18
    %p20 = scmp.eq.s32.totalorder %s19, 0
    %s22 = sadd.s32 %s21, 1
    %s23 = scalar_select %p20, %s21, %s22
    %p26 = pneg %p20
    %p27 = scmp.eq.s32.totalorder %s11, 1
    %p28 = por %p26, %p27
    %p29 = scmp.ne.s32.totalorder %s21, %s24
    %p30 = scmp.eq.s32.totalorder %s11, 0
    %p31 = por %p29, %p30
    %p32 = scmp.ne.s32.totalorder %s21, %s24
    %p33 = scmp.eq.s32.totalorder %s16, 1
    %p34 = por %p32, %p33
    %p35 = scmp.ne.s32.totalorder %s24, %s25
    %p36 = scmp.eq.s32.totalorder %s16, 0
    %p37 = por %p35, %p36
    %p38 = scmp.ne.s32.totalorder %s24, %s25
    %p39 = scmp.eq.s32.totalorder %s17, 1
    %p40 = por %p38, %p39
    %p42 = scmp.ne.s32.totalorder %s25, %s41
    %p43 = scmp.eq.s32.totalorder %s17, 0
    %p44 = por %p42, %p43
    %s46 = sadd.s32 %s45, 1
    %p49 = scmp.eq.s32.totalorder %s11, 1
    %p50 = scmp.ne.s32.totalorder %s45, %s47
    %p51 = scmp.eq.s32.totalorder %s11, 0
    %p52 = por %p50, %p51
    %p53 = scmp.ne.s32.totalorder %s45, %s47
    %p54 = scmp.eq.s32.totalorder %s16, 1
    %p55 = por %p53, %p54
    %p56 = scmp.ne.s32.totalorder %s47, %s48
    %p57 = scmp.eq.s32.totalorder %s16, 0
    %p58 = por %p56, %p57
    %p59 = scmp.ne.s32.totalorder %s47, %s48
    %p60 = scmp.eq.s32.totalorder %s17, 1
    %p61 = por %p59, %p60
    %p63 = scmp.ne.s32.totalorder %s48, %s62
    %p64 = scmp.eq.s32.totalorder %s17, 0
    %p65 = por %p63, %p64
    %s67 = sadd.s32 %s66, 1
    %p70 = scmp.eq.s32.totalorder %s11, 1
    %p71 = scmp.ne.s32.totalorder %s66, %s68
    %p72 = scmp.eq.s32.totalorder %s11, 0
    %p73 = por %p71, %p72
    %p74 = scmp.ne.s32.totalorder %s66, %s68
    %p75 = scmp.eq.s32.totalorder %s16, 1
    %p76 = por %p74, %p75
    %p77 = scmp.ne.s32.totalorder %s68, %s69
    %p78 = scmp.eq.s32.totalorder %s16, 0
    %p79 = por %p77, %p78
    %p80 = scmp.ne.s32.totalorder %s68, %s69
    %p81 = scmp.eq.s32.totalorder %s17, 1
    %p82 = por %p80, %p81
    %p84 = scmp.ne.s32.totalorder %s69, %s83
    %p85 = scmp.eq.s32.totalorder %s17, 0
    %p86 = por %p84, %p85
    %s88 = sadd.s32 %s87, 1
    %p91 = scmp.eq.s32.totalorder %s11, 1
    %p92 = scmp.ne.s32.totalorder %s87, %s89
    %p93 = scmp.eq.s32.totalorder %s11, 0
    %p94 = por %p92, %p93
    %p95 = scmp.ne.s32.totalorder %s87, %s89
    %p96 = scmp.eq.s32.totalorder %s16, 1
    %p97 = por %p95, %p96
    %p98 = scmp.ne.s32.totalorder %s89, %s90
    %p99 = scmp.eq.s32.totalorder %s16, 0
    %p100 = por %p98, %p99
    %p101 = scmp.ne.s32.totalorder %s89, %s90
    %p102 = scmp.eq.s32.totalorder %s17, 1
    %p103 = por %p101, %p102
    %p105 = scmp.ne.s32.totalorder %s90, %s104
    %p106 = scmp.eq.s32.totalorder %s17, 0
    %p107 = por %p105, %p106
    %s109 = sadd.s32 %s108, 1
    %p112 = scmp.eq.s32.totalorder %s11, 1
    %p113 = scmp.ne.s32.totalorder %s108, %s110
    %p114 = scmp.eq.s32.totalorder %s11, 0
    %p115 = por %p113, %p114
    %p116 = scmp.ne.s32.totalorder %s108, %s110
    %p117 = scmp.eq.s32.totalorder %s16, 1
    %p118 = por %p116, %p117
    %p119 = scmp.ne.s32.totalorder %s110, %s111
    %p120 = scmp.eq.s32.totalorder %s16, 0
    %p121 = por %p119, %p120
    %p122 = scmp.ne.s32.totalorder %s110, %s111
    %p123 = scmp.eq.s32.totalorder %s17, 1
    %p124 = por %p122, %p123
    %p126 = scmp.ne.s32.totalorder %s111, %s125
    %p127 = scmp.eq.s32.totalorder %s17, 0
    %p128 = por %p126, %p127
    %s129 = ssub.s32 %s11, %s18
    %p130 = scmp.eq.s32.totalorder %s129, 0
    %s132 = sadd.s32 %s131, 1
    %s133 = scalar_select %p130, %s131, %s132
    %p136 = pneg %p130
    %p137 = scmp.eq.s32.totalorder %s11, 1
    %p138 = por %p136, %p137
    %p139 = scmp.ne.s32.totalorder %s131, %s134
    %p140 = scmp.eq.s32.totalorder %s11, 0
    %p141 = por %p139, %p140
    %p142 = scmp.ne.s32.totalorder %s131, %s134
    %p143 = scmp.eq.s32.totalorder %s16, 1
    %p144 = por %p142, %p143
    %p145 = scmp.ne.s32.totalorder %s134, %s135
    %p146 = scmp.eq.s32.totalorder %s16, 0
    %p147 = por %p145, %p146
    %p148 = scmp.ne.s32.totalorder %s134, %s135
    %p149 = scmp.eq.s32.totalorder %s17, 1
    %p150 = por %p148, %p149
    %p152 = scmp.ne.s32.totalorder %s135, %s151
    %p153 = scmp.eq.s32.totalorder %s17, 0
    %p154 = por %p152, %p153
    %p155 = scmp.le.s32.totalorder 1, %s11
    %p156 = scmp.lt.s32.totalorder %s11, 3
    %p157 = pnand %p155, %p156
    %p158 = pneg %p157
    // Predicated region
    $region9: #{tpu_custom_call.1} parent=5 // pred_check
      _
    $region10: #{tpu_custom_call.1} parent=5 // pred_check_branch
      %160 = sbr.rel (%p157) target = $region12
    $region11: #{tpu_custom_call.1} parent=5 // pred_region
      %s161 = ssub.s32 %s11, 1
      // Predicated region
      $region13: #{tpu_custom_call.1} parent=11 // pred_check
        %p162 = pneg %p58
      $region14: #{tpu_custom_call.1} parent=11 // pred_check_branch
        %164 = sbr.rel (%p162) target = $region16
      $region15: #{tpu_custom_call.1} parent=11 // pred_region
        _
      $region16: #{tpu_custom_call.1} parent=11 // pred_fallthru
        _
      // Predicated region
      $region17: #{tpu_custom_call.1} parent=11 // pred_check
        %p165 = pneg %p79
      $region18: #{tpu_custom_call.1} parent=11 // pred_check_branch
        %167 = sbr.rel (%p165) target = $region20
      $region19: #{tpu_custom_call.1} parent=11 // pred_region
        _
      $region20: #{tpu_custom_call.1} parent=11 // pred_fallthru
        _
      // Predicated region
      $region21: #{tpu_custom_call.1} parent=11 // pred_check
        %p168 = pneg %p100
      $region22: #{tpu_custom_call.1} parent=11 // pred_check_branch
        %170 = sbr.rel (%p168) target = $region24
      $region23: #{tpu_custom_call.1} parent=11 // pred_region
        _
      $region24: #{tpu_custom_call.1} parent=11 // pred_fallthru
        _
      // Predicated region
      $region25: #{tpu_custom_call.1} parent=11 // pred_check
        %p171 = pneg %p121
      $region26: #{tpu_custom_call.1} parent=11 // pred_check_branch
        %173 = sbr.rel (%p171) target = $region28
      $region27: #{tpu_custom_call.1} parent=11 // pred_region
        _
      $region28: #{tpu_custom_call.1} parent=11 // pred_fallthru
        _
    $region12: #{tpu_custom_call.1} parent=5 // pred_fallthru
      _
    %p174 = scmp.lt.s32.totalorder %s11, 2
    // Predicated region
    $region29: #{tpu_custom_call.1} parent=5 // pred_check
      %p175 = pneg %p174
    $region30: #{tpu_custom_call.1} parent=5 // pred_check_branch
      %177 = sbr.rel (%p175) target = $region32
    $region31: #{tpu_custom_call.1} parent=5 // pred_region
      // Predicated region
      $region33: #{tpu_custom_call.1} parent=31 // pred_check
        %p178 = pneg %p31
      $region34: #{tpu_custom_call.1} parent=31 // pred_check_branch
        %180 = sbr.rel (%p178) target = $region36
      $region35: #{tpu_custom_call.1} parent=31 // pred_region
        %s181 = smul.u32 2, %s11
        %p182 = scmp.lt.s32.totalorder %s181, 3
        %s183 = scalar_select %p182, %s181, 3
        %s184 = smul.addr %s183, 8
        %s185 = smul.addr %s184, 8
        %s186 = scalar_lea.vmem %s0, %s185
        %s187 = smul.u32 2, %s11
      $region36: #{tpu_custom_call.1} parent=31 // pred_fallthru
        _
    $region32: #{tpu_custom_call.1} parent=5 // pred_fallthru
      _
    %p188 = scmp.le.s32.totalorder 1, %s11
    %p189 = scmp.lt.s32.totalorder %s11, 3
    %p190 = pnand %p188, %p189
    %p191 = pneg %p190
    // Predicated region
    $region37: #{tpu_custom_call.1} parent=5 // pred_check
      _
    $region38: #{tpu_custom_call.1} parent=5 // pred_check_branch
      %193 = sbr.rel (%p190) target = $region40
    $region39: #{tpu_custom_call.1} parent=5 // pred_region
      %s194 = ssub.s32 %s11, 1
      %s195 = smul.u32 2, %s16
      %p196 = scmp.lt.s32.totalorder %s195, 3
      %s197 = scalar_select %p196, %s195, 3
      %s198 = smul.addr %s197, 8
      %s199 = smul.addr %s198, 8
      %s200 = scalar_lea.vmem %s0, %s199
      %p201 = pneg %p37
      %p202 = pneg %p34
      %p203 = pneg %p58
      %p204 = pneg %p55
      %p205 = pneg %p79
      %p206 = pneg %p76
      %p207 = pneg %p100
      %p208 = pneg %p97
      %p209 = pneg %p121
      %p210 = pneg %p118
      %p211 = pneg %p147
      %p212 = pneg %p144
      %s213 = smul.u32 2, %s16
      %p214 = scmp.lt.s32.totalorder %s213, 3
      %s215 = scalar_select %p214, %s213, 3
      %s216 = smul.addr %s215, 8
      %s217 = smul.addr %s216, 8
      %s218 = scalar_lea.vmem %s5, %s217
      %s219 = smul.u32 2, %s16
      %p220 = scmp.lt.s32.totalorder %s219, 3
      %s221 = scalar_select %p220, %s219, 3
      %s222 = smul.addr %s221, 8
      %s223 = smul.addr %s222, 8
      %s224 = scalar_lea.vmem %s0, %s223
      %s225 = smul.u32 2, %s16
      %s226 = smul.u32 2, %s16
      %p227 = scmp.lt.s32.totalorder %s226, 3
      %s228 = scalar_select %p227, %s226, 3
      %s229 = smul.addr %s228, 8
      %s230 = smul.addr %s229, 8
      %s231 = scalar_lea.vmem %s5, %s230
      %s232 = smul.u32 2, %s16
      %v233 = vld [vmem:[%s224] sm:$0xff]
      %v234 = vld [vmem:[%s224 + $0x8] sm:$0xff]
      %v235 = vld [vmem:[%s224 + $0x10] sm:$0xff]
      %v236 = vld [vmem:[%s224 + $0x18] sm:$0xff]
      %v237 = vld [vmem:[%s224 + $0x20] sm:$0xff]
      %v238 = vld [vmem:[%s224 + $0x28] sm:$0xff]
      %v239 = vld [vmem:[%s224 + $0x30] sm:$0xff]
      %v240 = vld [vmem:[%s224 + $0x38] sm:$0xff]
      %v241 = vld [vmem:[%s224 + $0x40] sm:$0xff]
      %v242 = vld [vmem:[%s224 + $0x48] sm:$0xff]
      %v243 = vld [vmem:[%s224 + $0x50] sm:$0xff]
      %v244 = vld [vmem:[%s224 + $0x58] sm:$0xff]
      %v245 = vld [vmem:[%s224 + $0x60] sm:$0xff]
      %v246 = vld [vmem:[%s224 + $0x68] sm:$0xff]
      %v247 = vld [vmem:[%s224 + $0x70] sm:$0xff]
      %v248 = vld [vmem:[%s224 + $0x78] sm:$0xff]
      %vm249 = vcmask 261120
      %v250 = vsel %vm249, %v233, 0.0
      %v251 = vsel %vm249, %v234, 0.0
      %v252 = vadd.f32 %v250, %v251
      %v253 = vsel %vm249, %v235, 0.0
      %v254 = vadd.f32 %v252, %v253
      %v255 = vsel %vm249, %v236, 0.0
      %v256 = vadd.f32 %v254, %v255
      %v257 = vsel %vm249, %v237, 0.0
      %v258 = vadd.f32 %v256, %v257
      %v259 = vsel %vm249, %v238, 0.0
      %v260 = vadd.f32 %v258, %v259
      %v261 = vsel %vm249, %v239, 0.0
      %v262 = vadd.f32 %v260, %v261
      %v263 = vsel %vm249, %v240, 0.0
      %v264 = vadd.f32 %v262, %v263
      %v265 = vrot.slane %v264, 4
      %v266 = vadd.f32 %v264, %v265
      %v267 = vrot.slane %v266, 2
      %v268 = vadd.f32 %v266, %v267
      %v269 = vrot.slane %v268, 1
      %v270 = vadd.f32 %v268, %v269
      %v271 = vsel %vm249, %v241, 0.0
      %v272 = vsel %vm249, %v242, 0.0
      %v273 = vadd.f32 %v271, %v272
      %v274 = vsel %vm249, %v243, 0.0
      %v275 = vadd.f32 %v273, %v274
      %v276 = vsel %vm249, %v244, 0.0
      %v277 = vadd.f32 %v275, %v276
      %v278 = vsel %vm249, %v245, 0.0
      %v279 = vadd.f32 %v277, %v278
      %v280 = vsel %vm249, %v246, 0.0
      %v281 = vadd.f32 %v279, %v280
      %v282 = vsel %vm249, %v247, 0.0
      %v283 = vadd.f32 %v281, %v282
      %v284 = vsel %vm249, %v248, 0.0
      %v285 = vadd.f32 %v283, %v284
      %v286 = vrot.slane %v285, 4
      %v287 = vadd.f32 %v285, %v286
      %v288 = vrot.slane %v287, 2
      %v289 = vadd.f32 %v287, %v288
      %v290 = vrot.slane %v289, 1
      %v291 = vadd.f32 %v289, %v290
      %v292 = vmul.f32 %v270, 0.015625
      %v293 = vmul.f32 %v291, 0.015625
      %v294 = vld [vmem:[%s1] sm:$0xff]
      %v295 = vld [vmem:[%s1 + $0x8] sm:$0xff]
      %v296 = vld [vmem:[%s1 + $0x10] sm:$0xff]
      %v297 = vld [vmem:[%s1 + $0x18] sm:$0xff]
      %v298 = vld [vmem:[%s2] sm:$0x1]
      %v300 = vperm.slane %v298, 0
      %vm304 = vcmask 1041409
      %v305 = vsel %vm304, %v293, %v292
      %v306 = vsel %vm249, %v305, 0
      %308 = vmatpush.msra.mxu0 0.0
      %309 = vmatpush.msra.mxu0 0.0
      %310 = vmatpush.msra.mxu0 0.0
      %311 = vmatpush.msra.mxu0 0.0
      %312 = vmatpush.msra.mxu0 0.0
      %313 = vmatpush.msra.mxu0 0.0
      %314 = vmatpush.msra.mxu0 0.0
      %315 = vmatpush.msra.mxu0 0.0
      %316 = vmatpush.msra.mxu0 0.0
      %317 = vmatpush.msra.mxu0 0.0
      %318 = vmatpush.msra.mxu0 0.0
      %319 = vmatpush.msra.mxu0 0.0
      %320 = vmatpush.msra.mxu0 %v297
      %321 = vmatpush.msra.mxu0 %v296
      %322 = vmatpush.msra.mxu0 %v295
      %323 = vmatpush.msra.mxu0 %v294
      %324 = vmatmul.f32.gmra.mxu0 %v306
      %v325 = vpop.f32.mrf.mxu0
      %v326 = vadd.f32 %v300, %v325
      %327 = vdwg.mxu0
      %v328 = vmax.f32 %v326, 0.0
      %v329 = vld [vmem:[%s3] sm:$0xff]
      %v330 = vld [vmem:[%s4] sm:$0x1]
      %v332 = vperm.slane %v330, 0
      %vm334 = vcmask 64512
      %v336 = vsel %vm334, %v328, 0
      %338 = vmatpush.msra.mxu0 0.0
      %339 = vmatpush.msra.mxu0 0.0
      %340 = vmatpush.msra.mxu0 0.0
      %341 = vmatpush.msra.mxu0 0.0
      %342 = vmatpush.msra.mxu0 0.0
      %343 = vmatpush.msra.mxu0 0.0
      %344 = vmatpush.msra.mxu0 0.0
      %345 = vmatpush.msra.mxu0 0.0
      %346 = vmatpush.msra.mxu0 0.0
      %347 = vmatpush.msra.mxu0 0.0
      %348 = vmatpush.msra.mxu0 0.0
      %349 = vmatpush.msra.mxu0 0.0
      %350 = vmatpush.msra.mxu0 0.0
      %351 = vmatpush.msra.mxu0 0.0
      %352 = vmatpush.msra.mxu0 0.0
      %353 = vmatpush.msra.mxu0 %v329
      %354 = vmatmul.f32.gmra.mxu0 %v336
      %v355 = vpop.f32.mrf.mxu0
      %v356 = vadd.f32 %v332, %v355
      %357 = vdwg.mxu0
      %v358 = vadd.f32 %v356, 3.0
      %v359 = vmax.f32 %v358, 0.0
      %v360 = vmin.f32 %v359, 6.0
      %v361 = vmul.f32 %v360, 0.16666667
      %v363 = vrot.slane %v361, 1
      %v364 = vperm.slane %v361, 0
      %v365 = vperm.slane %v363, 0
      %v368 = vmul.f32 %v233, %v364
      %v369 = vmul.f32 %v234, %v364
      %v370 = vmul.f32 %v235, %v364
      %v371 = vmul.f32 %v236, %v364
      %v372 = vmul.f32 %v237, %v364
      %v373 = vmul.f32 %v238, %v364
      %v374 = vmul.f32 %v239, %v364
      %v375 = vmul.f32 %v240, %v364
      %v376 = vmul.f32 %v241, %v365
      %v377 = vmul.f32 %v242, %v365
      %v378 = vmul.f32 %v243, %v365
      %v379 = vmul.f32 %v244, %v365
      %v380 = vmul.f32 %v245, %v365
      %v381 = vmul.f32 %v246, %v365
      %v382 = vmul.f32 %v247, %v365
      %v383 = vmul.f32 %v248, %v365
      %384 = vst.msk [vmem:[%s231] sm:$0xff] %vm249, %v368
      %385 = vst.msk [vmem:[%s231 + $0x8] sm:$0xff] %vm249, %v369
      %386 = vst.msk [vmem:[%s231 + $0x10] sm:$0xff] %vm249, %v370
      %387 = vst.msk [vmem:[%s231 + $0x18] sm:$0xff] %vm249, %v371
      %388 = vst.msk [vmem:[%s231 + $0x20] sm:$0xff] %vm249, %v372
      %389 = vst.msk [vmem:[%s231 + $0x28] sm:$0xff] %vm249, %v373
      %390 = vst.msk [vmem:[%s231 + $0x30] sm:$0xff] %vm249, %v374
      %391 = vst.msk [vmem:[%s231 + $0x38] sm:$0xff] %vm249, %v375
      %392 = vst.msk [vmem:[%s231 + $0x40] sm:$0xff] %vm249, %v376
      %393 = vst.msk [vmem:[%s231 + $0x48] sm:$0xff] %vm249, %v377
      %394 = vst.msk [vmem:[%s231 + $0x50] sm:$0xff] %vm249, %v378
      %395 = vst.msk [vmem:[%s231 + $0x58] sm:$0xff] %vm249, %v379
      %396 = vst.msk [vmem:[%s231 + $0x60] sm:$0xff] %vm249, %v380
      %397 = vst.msk [vmem:[%s231 + $0x68] sm:$0xff] %vm249, %v381
      %398 = vst.msk [vmem:[%s231 + $0x70] sm:$0xff] %vm249, %v382
      %399 = vst.msk [vmem:[%s231 + $0x78] sm:$0xff] %vm249, %v383
      %s400 = smul.u32 2, %s16
      %p401 = scmp.lt.s32.totalorder %s400, 3
      %s402 = scalar_select %p401, %s400, 3
      %s403 = smul.addr %s402, 8
      %s404 = smul.addr %s403, 8
      %s405 = scalar_lea.vmem %s5, %s404
      // Predicated region
      $region41: #{tpu_custom_call.1} parent=39 // pred_check
        %p406 = pneg %p144
      $region42: #{tpu_custom_call.1} parent=39 // pred_check_branch
        %408 = sbr.rel (%p406) target = $region44
      $region43: #{tpu_custom_call.1} parent=39 // pred_region
        %s409 = smul.u32 2, %s16
      $region44: #{tpu_custom_call.1} parent=39 // pred_fallthru
        _
    $region40: #{tpu_custom_call.1} parent=5 // pred_fallthru
      _
    %p410 = scmp.le.s32.totalorder 2, %s11
    // Predicated region
    $region45: #{tpu_custom_call.1} parent=5 // pred_check
      %p411 = pneg %p410
    $region46: #{tpu_custom_call.1} parent=5 // pred_check_branch
      %413 = sbr.rel (%p411) target = $region48
    $region47: #{tpu_custom_call.1} parent=5 // pred_region
      %s414 = ssub.s32 %s11, 2
      // Predicated region
      $region49: #{tpu_custom_call.1} parent=47 // pred_check
        %p415 = pneg %p150
      $region50: #{tpu_custom_call.1} parent=47 // pred_check_branch
        %417 = sbr.rel (%p415) target = $region52
      $region51: #{tpu_custom_call.1} parent=47 // pred_region
        %s418 = smul.u32 2, %s17
        %p419 = scmp.lt.s32.totalorder %s418, 3
        %s420 = scalar_select %p419, %s418, 3
        %s421 = smul.addr %s420, 8
        %s422 = smul.addr %s421, 8
        %s423 = scalar_lea.vmem %s5, %s422
      $region52: #{tpu_custom_call.1} parent=47 // pred_fallthru
        _
    $region48: #{tpu_custom_call.1} parent=5 // pred_fallthru
      _
  $region6: #{tpu_custom_call.1} parent=0 // loop_footer
    %s15 = sadd.s32 1, %s11
  $region7: #{tpu_custom_call.1} parent=0 // loop_footer_branch
    %10 = sbr.rel target = $region3
  $region8: #{tpu_custom_call.1} parent=0 // loop_exit
    _

</llo_original>
